<compile_context>
chip_gen: v6e
topology: v6e:2x2x1
jax: 0.10.0
libtpu: 0.0.40
codegen_flags: <defaults>
</compile_context>

<pallas_src>
import jax
import jax.numpy as jnp
from jax.experimental import pallas as pl
from jax.experimental.pallas import tpu as pltpu


def _pool_heads_kernel(h_ref, w_ref, b_ref, o_ref, acc_ref):
    """Fused mean-pool (seq-tiled running sum) + all aspect heads.

    h_ref  : (tB, tS, D_eff)   seq-tile of hidden states (bf16 or f32)
    w_ref  : (D_eff, AC_pad)   fused head weights, pre-scaled by 1/S (f32)
    b_ref  : (1, AC_pad)       fused head biases (f32)
    o_ref  : (tB, AC_pad)      fused, lane-dense logits slab
    acc_ref: (tB, D_eff) f32   running sum over the sequence dimension
    """
    s = pl.program_id(1)

    @pl.when(s == 0)
    def _init():
        acc_ref[...] = jnp.zeros_like(acc_ref)

    # Cast to f32 on load (v5e has no bf16 VALU; free on v6e/v7x) and
    # accumulate the sequence sum.  The 1/S of the mean is folded into w_ref.
    # NOTE(v5e): if the bundle dump ever shows VALU/XLU binding instead of the
    # vld/DMA slot, restructure this sublane reduce as strided row adds.
    acc_ref[...] += jnp.sum(h_ref[...].astype(jnp.float32), axis=1)

    @pl.when(s == pl.num_programs(1) - 1)
    def _finalize():
        # One MXU push for all aspects at once; one unmasked lane-dense store.
        logits = jnp.dot(acc_ref[...], w_ref[...],
                         preferred_element_type=jnp.float32) + b_ref[...]
        o_ref[...] = logits.astype(o_ref.dtype)


def _vmem_capacity_bytes():
    """Per-core VMEM capacity (generation-aware); conservative fallback."""
    try:
        return int(pltpu.get_tpu_info().vmem_capacity_bytes)
    except Exception:
        return 64 * 1024 * 1024  # v7x per-TC value; safe on v5e/v6e too


def _pick_batch_tile(B):
    """>= 2 batch tiles (v7x megacore) when block_b can stay 8-aligned.

    The output block is (block_b, AC_pad), so block_b sits on the sublane axis
    and must be a multiple of 8 or equal to the full batch.
    """
    if B % 16 == 0:
        return B // 2
    return B


def _pick_seq_tile(block_b, S_eff, D_eff, itemsize, align, budget_bytes):
    """Largest aligned seq tile whose (block_b, tS, D_eff) block fits budget."""
    bytes_per_row = max(1, block_b * D_eff * itemsize)
    if S_eff * bytes_per_row <= budget_bytes:
        return S_eff                      # untiled seq: single full block
    t = (budget_bytes // bytes_per_row) // align * align
    return max(align, min(t, S_eff))      # caller zero-pads seq if needed


def sentiment_heads(hidden, w_stack, b_stack, *, block_b=None, block_s=None,
                    hidden_buffers=2):
    """Mean-pool over seq + all per-aspect linear heads in one pallas_call.

    hidden : (B, S, D)  last_hidden_state (bf16 recommended; any float works)
    w_stack: (A, D, C)  stacked head weights (pooled @ W layout)
    b_stack: (A, 1, C)  stacked head biases
    returns: (B, A*C)   fused logits; aspect a lives in columns [a*C, (a+1)*C)
    """
    A, D, C = w_stack.shape
    B, S, _ = hidden.shape
    AC = A * C
    itemsize = jnp.dtype(hidden.dtype).itemsize

    # --- lane density: fold k consecutive seq positions into the lane axis
    #     when D < 128 (contiguous reshape, free).  The pooled sum distributes
    #     over the k groups, so tiling the weights k times is exact.
    k = 1
    if D < 128 and 128 % D == 0:
        k = 128 // D
        while k > 1 and S % k != 0:
            k //= 2
    D_eff, S_eff = D * k, S // k
    if k > 1:
        hidden = hidden.reshape(B, S_eff, D_eff)

    # --- fuse all aspect heads into one matmul, fold in 1/S (true S), tile
    #     for the seq folding, zero-pad the head dim to a multiple of 128.
    AC_pad = pl.cdiv(AC, 128) * 128
    w_flat = (w_stack.astype(jnp.float32) / jnp.float32(S))
    w_flat = w_flat.transpose(1, 0, 2).reshape(D, AC)
    if k > 1:
        w_flat = jnp.tile(w_flat, (k, 1))                       # (D_eff, AC)
    b_flat = b_stack.astype(jnp.float32).reshape(1, AC)
    if AC_pad != AC:
        w_flat = jnp.pad(w_flat, ((0, 0), (0, AC_pad - AC)))
        b_flat = jnp.pad(b_flat, ((0, 0), (0, AC_pad - AC)))

    # --- batch tiling (megacore) ---
    if block_b is None:
        block_b = _pick_batch_tile(B)
    assert B % block_b == 0 and (block_b == B or block_b % 8 == 0)

    # --- seq tiling: generation-aware per-buffer budget ---
    vmem_cap = _vmem_capacity_bytes()
    budget = min(12 << 20, vmem_cap // 8)          # ~8 MiB v7x, 12 MiB v5e/v6e
    sub_align = 32 if itemsize == 2 else 8         # bf16 packs 16 rows/sublane
    if block_s is None:
        block_s = _pick_seq_tile(block_b, S_eff, D_eff, itemsize,
                                 sub_align, budget)
    # Zero-pad the seq dim instead of reverting to an untiled block: zeros do
    # not change the pooled sum (1/S uses the true S, folded into w_flat).
    S_run = pl.cdiv(S_eff, block_s) * block_s
    if S_run != S_eff:
        hidden = jnp.pad(hidden, ((0, 0), (0, S_run - S_eff), (0, 0)))
    grid = (B // block_b, S_run // block_s)

    # --- explicit VMEM limit sized from actual buffer needs (+ headroom) ---
    need = (hidden_buffers * block_b * block_s * D_eff * itemsize  # hidden
            + 2 * D_eff * AC_pad * 4                               # weights
            + 2 * 8 * AC_pad * 4                                   # bias
            + 2 * max(8, block_b) * AC_pad * 4                     # out
            + max(8, block_b) * D_eff * 4)                         # acc scratch
    vmem_limit = int(min(vmem_cap * 3 // 4,
                         max(32 << 20, need + (4 << 20))))

    cost = pl.CostEstimate(
        flops=2 * B * D_eff * AC_pad,
        transcendentals=0,
        bytes_accessed=B * S * D * itemsize + D_eff * AC_pad * 4
                       + B * AC_pad * 4)

    h_map = lambda b, s: (b, s, 0)
    if hidden_buffers == 2:
        h_spec = pl.BlockSpec((block_b, block_s, D_eff), h_map)
    else:  # deeper pipelining of the hidden stream (e.g. 3 on v7x)
        h_spec = pl.BlockSpec((block_b, block_s, D_eff), h_map,
                              pipeline_mode=pl.Buffered(hidden_buffers))

    out = pl.pallas_call(
        _pool_heads_kernel,
        out_shape=jax.ShapeDtypeStruct((B, AC_pad), jnp.float32),
        grid_spec=pltpu.PrefetchScalarGridSpec(
            num_scalar_prefetch=0,
            grid=grid,
            in_specs=[
                h_spec,
                pl.BlockSpec((D_eff, AC_pad), lambda b, s: (0, 0)),  # weights
                pl.BlockSpec((1, AC_pad), lambda b, s: (0, 0)),      # biases
            ],
            out_specs=pl.BlockSpec((block_b, AC_pad), lambda b, s: (b, 0)),
            scratch_shapes=[pltpu.VMEM((block_b, D_eff), jnp.float32)],
        ),
        compiler_params=pltpu.CompilerParams(
            # batch tiles independent (megacore-shardable on v7x);
            # seq is the pooled-sum reduction axis -> arbitrary, minor-most.
            dimension_semantics=("parallel", "arbitrary"),
            vmem_limit_bytes=vmem_limit),
        cost_estimate=cost,
    )(hidden, w_flat, b_flat)

    return out[:, :AC]


class SentimentClassifierPallas:
    """Mirrors SentimentClassifier.forward for the 'bart' branch at inference.

    - backbone last_hidden_state: synthetic deterministic encoder (plain JAX)
    - x = last_hidden_state.mean(dim=1)            (inside Pallas kernel; note:
      divides by S, not by the unmasked-token count — same as the reference)
    - out[aspect] = Dropout(x) @ W_a^T + b_a       (Dropout identity in eval;
      all aspect heads fused into one matmul inside the Pallas kernel)
    """

    def __init__(self, num_classes, aspects, d_model=32, vocab_size=128,
                 drop_prob=0.3, seed=0, stream_dtype=jnp.bfloat16):
        self.aspects = list(aspects)
        self.num_classes = num_classes
        self.d_model = d_model
        self.stream_dtype = stream_dtype
        key = jax.random.PRNGKey(seed)
        k_emb, k_w, k_b = jax.random.split(key, 3)
        # synthetic "backbone" embedding table
        self.embedding = (jax.random.normal(k_emb, (vocab_size, d_model),
                                            dtype=jnp.float32) * 0.02)
        A = len(self.aspects)
        # nn.Linear(d_model, num_classes): weight (C, D), bias (C,).
        # Stored transposed (D, C) for the kernel's pooled @ W.
        bound = 1.0 / (d_model ** 0.5)
        self.w_stack = jax.random.uniform(k_w, (A, d_model, num_classes),
                                          minval=-bound, maxval=bound,
                                          dtype=jnp.float32)
        self.b_stack = jax.random.uniform(k_b, (A, 1, num_classes),
                                          minval=-bound, maxval=bound,
                                          dtype=jnp.float32)
        # jit the whole forward so the bf16 cast fuses into the mask multiply
        # (no standalone HBM convert pass) and head slicing fuses too.
        self._forward = jax.jit(self._forward_impl)

    def _backbone(self, input_ids, attention_mask):
        # Deterministic stand-in for BartModel(...)['last_hidden_state'].
        h = self.embedding[input_ids]                              # (B, S, D)
        h = h * attention_mask[..., None].astype(jnp.float32)
        # produce the hidden stream directly in bf16 (cast fused under jit)
        return h.astype(self.stream_dtype)

    def _forward_impl(self, input_ids, attention_mask):
        hidden = self._backbone(input_ids, attention_mask)         # (B, S, D)
        logits = sentiment_heads(hidden, self.w_stack, self.b_stack)  # (B,A*C)
        C = self.num_classes
        return {aspect: logits[:, i * C:(i + 1) * C]
                for i, aspect in enumerate(self.aspects)}

    def __call__(self, input_ids, attention_mask):
        return self._forward(input_ids, attention_mask)


if __name__ == "__main__":
    B, S, D, C = 2, 8, 32, 3
    aspects = ["food", "service"]

    key = jax.random.PRNGKey(0)
    k_ids, _ = jax.random.split(key)
    input_ids = jax.random.randint(k_ids, (B, S), 0, 128, dtype=jnp.int32)
    attention_mask = jnp.ones((B, S), dtype=jnp.int32)

    model = SentimentClassifierPallas(num_classes=C, aspects=aspects,
                                      d_model=D, vocab_size=128, seed=0)
    out = model(input_ids, attention_mask)
    for aspect in aspects:
        jax.block_until_ready(out[aspect])

    # reference check in plain JAX (same bf16-quantized hidden stream)
    hidden_q = model._backbone(input_ids, attention_mask).astype(jnp.float32)
    pooled = hidden_q.mean(axis=1)
    ok = True
    for i, aspect in enumerate(aspects):
        ref = pooled @ model.w_stack[i] + model.b_stack[i, 0]
        ok &= bool(jnp.allclose(out[aspect], ref, atol=1e-4, rtol=1e-4))
        ok &= out[aspect].shape == (B, C)
    if ok:
        print("KERNEL_OK")
</pallas_src>

<mosaic_0001>
module attributes {stable_mosaic.version = 11 : i64} {
  func.func @_pool_heads_kernel(%arg0: i32, %arg1: i32, %arg2: memref<2x2x128xbf16, #tpu.memory_space<vmem>>, %arg3: memref<128x128xf32, #tpu.memory_space<vmem>>, %arg4: memref<1x128xf32, #tpu.memory_space<vmem>>, %arg5: memref<2x128xf32, #tpu.memory_space<vmem>>, %arg6: memref<2x128xf32, #tpu.memory_space<vmem>>) attributes {dimension_semantics = [#tpu.dimension_semantics<parallel>, #tpu.dimension_semantics<arbitrary>], iteration_bounds = array<i64: 1, 1>, scalar_prefetch = 0 : i64, scratch_operands = 1 : i64, tpu.core_type = #tpu.core_type<tc>, window_params = [{transform_indices = @transform_0, window_bounds = array<i64: 2, 2, 128>}, {pipeline_mode = #tpu.pipeline_mode<synchronous>, transform_indices = @transform_1, window_bounds = array<i64: 128, 128>}, {pipeline_mode = #tpu.pipeline_mode<synchronous>, transform_indices = @transform_2, window_bounds = array<i64: 1, 128>}, {transform_indices = @transform_3, window_bounds = array<i64: 2, 128>}]} {
    %c0_i32 = arith.constant 0 : i32
    %0 = arith.cmpi eq, %arg1, %c0_i32 : i32
    %1 = arith.extui %0 : i1 to i32
    %c0_i32_0 = arith.constant 0 : i32
    %2 = arith.cmpi ne, %1, %c0_i32_0 : i32
    scf.if %2 {
      %cst_9 = arith.constant 0.000000e+00 : f32
      %12 = vector.broadcast %cst_9 : f32 to vector<2x128xf32>
      %c0_10 = arith.constant 0 : index
      %c0_11 = arith.constant 0 : index
      %13 = vector.load %arg6[%c0_10, %c0_11] : memref<2x128xf32, #tpu.memory_space<vmem>>, vector<2x128xf32>
      tpu.vector_store %arg6[%c0_10, %c0_11], %12 {strides = array<i32>} : memref<2x128xf32, #tpu.memory_space<vmem>>, vector<2x128xf32>,
    } else {
    }
    %c0 = arith.constant 0 : index
    %c0_1 = arith.constant 0 : index
    %3 = vector.load %arg6[%c0, %c0_1] : memref<2x128xf32, #tpu.memory_space<vmem>>, vector<2x128xf32>
    %c0_2 = arith.constant 0 : index
    %c0_3 = arith.constant 0 : index
    %c0_4 = arith.constant 0 : index
    %4 = vector.load %arg2[%c0_2, %c0_3, %c0_4] : memref<2x2x128xbf16, #tpu.memory_space<vmem>>, vector<2x2x128xbf16>
    %5 = arith.extf %4 : vector<2x2x128xbf16> to vector<2x2x128xf32>
    %cst = arith.constant dense<0.000000e+00> : vector<2x128xf32>
    %6 = vector.multi_reduction <add>, %5, %cst [1] : vector<2x2x128xf32> to vector<2x128xf32>
    %7 = arith.addf %3, %6 : vector<2x128xf32>
    %c0_5 = arith.constant 0 : index
    %c0_6 = arith.constant 0 : index
    %8 = vector.load %arg6[%c0_5, %c0_6] : memref<2x128xf32, #tpu.memory_space<vmem>>, vector<2x128xf32>
    tpu.vector_store %arg6[%c0_5, %c0_6], %7 {strides = array<i32>} : memref<2x128xf32, #tpu.memory_space<vmem>>, vector<2x128xf32>,
    %c0_i32_7 = arith.constant 0 : i32
    %9 = arith.cmpi eq, %arg1, %c0_i32_7 : i32
    %10 = arith.extui %9 : i1 to i32
    %c0_i32_8 = arith.constant 0 : i32
    %11 = arith.cmpi ne, %10, %c0_i32_8 : i32
    scf.if %11 {
      %c0_9 = arith.constant 0 : index
      %c0_10 = arith.constant 0 : index
      %12 = vector.load %arg6[%c0_9, %c0_10] : memref<2x128xf32, #tpu.memory_space<vmem>>, vector<2x128xf32>
      %c0_11 = arith.constant 0 : index
      %c0_12 = arith.constant 0 : index
      %13 = vector.load %arg3[%c0_11, %c0_12] : memref<128x128xf32, #tpu.memory_space<vmem>>, vector<128x128xf32>
      %cst_13 = arith.constant dense<0.000000e+00> : vector<2x128xf32>
      %14 = tpu.matmul %12, %13, %cst_13 {dimension_numbers = #tpu.dot_dimension_numbers<[1], [0], [0], [1], [0, 0, 1, 1], [], []>} : vector<2x128xf32>, vector<128x128xf32>, vector<2x128xf32> -> vector<2x128xf32>
      %c0_14 = arith.constant 0 : index
      %c0_15 = arith.constant 0 : index
      %15 = vector.load %arg4[%c0_14, %c0_15] : memref<1x128xf32, #tpu.memory_space<vmem>>, vector<1x128xf32>
      %16 = vector.broadcast %15 : vector<1x128xf32> to vector<2x128xf32>
      %17 = arith.addf %14, %16 : vector<2x128xf32>
      %c0_16 = arith.constant 0 : index
      %c0_17 = arith.constant 0 : index
      %18 = vector.load %arg5[%c0_16, %c0_17] : memref<2x128xf32, #tpu.memory_space<vmem>>, vector<2x128xf32>
      tpu.vector_store %arg5[%c0_16, %c0_17], %17 {strides = array<i32>} : memref<2x128xf32, #tpu.memory_space<vmem>>, vector<2x128xf32>,
    } else {
    }
    return
  }
  func.func @transform_0(%arg0: i32, %arg1: i32) -> (i32, i32, i32) {
    %c0_i32 = arith.constant 0 : i32
    %c0_i32_0 = arith.constant 0 : i32
    return %arg0, %arg1, %c0_i32 : i32, i32, i32
  }
  func.func @transform_1(%arg0: i32, %arg1: i32) -> (i32, i32) {
    %c0_i32 = arith.constant 0 : i32
    %c0_i32_0 = arith.constant 0 : i32
    %c0_i32_1 = arith.constant 0 : i32
    return %c0_i32, %c0_i32_0 : i32, i32
  }
  func.func @transform_2(%arg0: i32, %arg1: i32) -> (i32, i32) {
    %c0_i32 = arith.constant 0 : i32
    %c0_i32_0 = arith.constant 0 : i32
    %c0_i32_1 = arith.constant 0 : i32
    return %c0_i32, %c0_i32_0 : i32, i32
  }
  func.func @transform_3(%arg0: i32, %arg1: i32) -> (i32, i32) {
    %c0_i32 = arith.constant 0 : i32
    %c0_i32_0 = arith.constant 0 : i32
    return %arg0, %c0_i32 : i32, i32
  }
}

</mosaic_0001>

<llo_original>
// kernel: _forward_impl.1
$region0: #{_forward_impl.1}
  #allocation0 [shape = 'u32[]', space=smem, size = 0x4, offset = 0x4, fixed_abs, tag = 'smem constant byte address 0x4 - core index']
  #allocation1 [shape = 'u32[144,128]{1,0:T(1,128)}', space=vmem, size = 0x12000, scoped, tag = 'internal scratch']
  #allocation2 [shape = 'f32[2,128]{1,0:T(2,128)}', space=vmem, size = 0x400, scoped, tag = 'scratch operand']
  %s0 = inlined_call_operand.vmem [shape: bf16[2,2,128], index: 0, kind: input, shape index: {}]
  %s1 = inlined_call_operand.vmem [shape: f32[128,128], index: 1, kind: input, shape index: {}]
  %s2 = inlined_call_operand.vmem [shape: f32[1,128], index: 2, kind: input, shape index: {}]
  %s3 = inlined_call_operand.vmem [shape: f32[2,128], index: 3, kind: output, shape index: {}]
  %s4 = sld [smem:[#allocation0]]
  $region30: #{_forward_impl.1} parent=0
    _
  %s6 = ssub.s32 1, %s4
  %s7 = scalar_select 0, %s6, %s4
  // Predicated region
  $region2: #{_forward_impl.1} parent=0 // pred_check
    _
  $region3: #{_forward_impl.1} parent=0 // pred_check_branch
    %9 = sbr.rel (0) target = $region5
  $region4: #{_forward_impl.1} parent=0 // pred_region
    _
  $region5: #{_forward_impl.1} parent=0 // pred_fallthru
    _
  // Predicated region
  $region6: #{_forward_impl.1} parent=0 // pred_check
    _
  $region7: #{_forward_impl.1} parent=0 // pred_check_branch
    %11 = sbr.rel (0) target = $region9
  $region8: #{_forward_impl.1} parent=0 // pred_region
    _
  $region9: #{_forward_impl.1} parent=0 // pred_fallthru
    _
  // Predicated region
  $region10: #{_forward_impl.1} parent=0 // pred_check
    _
  $region11: #{_forward_impl.1} parent=0 // pred_check_branch
    %13 = sbr.rel (0) target = $region13
  $region12: #{_forward_impl.1} parent=0 // pred_region
    _
  $region13: #{_forward_impl.1} parent=0 // pred_fallthru
    _
  %p14 = scmp.eq.s32.totalorder 0, 0
  // Predicated region
  $region14: #{_forward_impl.1} parent=0 // pred_check
    %p15 = pneg %p14
  $region15: #{_forward_impl.1} parent=0 // pred_check_branch
    %17 = sbr.rel (%p15) target = $region17
  $region16: #{_forward_impl.1} parent=0 // pred_region
    %18 = vst [vmem:[#allocation2] sm:$0x3] 0.0
  $region17: #{_forward_impl.1} parent=0 // pred_fallthru
    _
  %v19 = vld [vmem:[#allocation2] sm:$0x3]
  %v20 = vld [vmem:[%s0] sm:$0x1]
  %v21 = vld [vmem:[%s0 + $0x1] sm:$0x1]
  %v22 = vunpack.c.l.bf16 %v20
  %v23 = vunpack.c.l.bf16 %v21
  %vm24 = vcmask 1041408
  %v25 = vsel %vm24, %v22, 0.0
  %v26 = vrot.slane %v25, 4
  %v27 = vadd.f32 %v25, %v26
  %v28 = vrot.slane %v27, 2
  %v29 = vadd.f32 %v27, %v28
  %v30 = vrot.slane %v29, 1
  %v31 = vadd.f32 %v29, %v30
  %v32 = vsel %vm24, %v23, 0.0
  %v33 = vrot.slane %v32, 4
  %v34 = vadd.f32 %v32, %v33
  %v35 = vrot.slane %v34, 2
  %v36 = vadd.f32 %v34, %v35
  %v37 = vrot.slane %v36, 1
  %v38 = vadd.f32 %v36, %v37
  %vm41 = vcmask 1041409
  %v42 = vsel %vm41, %v38, %v31
  %v44 = vadd.f32 %v19, %v42
  %45 = vst [vmem:[#allocation2] sm:$0x3] %v44
  // Predicated region
  $region18: #{_forward_impl.1} parent=0 // pred_check
    %p46 = pneg %p14
  $region19: #{_forward_impl.1} parent=0 // pred_check_branch
    %48 = sbr.rel (%p46) target = $region21
  $region20: #{_forward_impl.1} parent=0 // pred_region
    %v49 = vld [vmem:[#allocation2] sm:$0x3]
    %v50 = vld [vmem:[%s1] sm:$0xff]
    %v51 = vld [vmem:[%s1 + $0x8] sm:$0xff]
    %v52 = vld [vmem:[%s1 + $0x10] sm:$0xff]
    %v53 = vld [vmem:[%s1 + $0x18] sm:$0xff]
    %v54 = vld [vmem:[%s1 + $0x20] sm:$0xff]
    %v55 = vld [vmem:[%s1 + $0x28] sm:$0xff]
    %v56 = vld [vmem:[%s1 + $0x30] sm:$0xff]
    %v57 = vld [vmem:[%s1 + $0x38] sm:$0xff]
    %v58 = vld [vmem:[%s1 + $0x40] sm:$0xff]
    %v59 = vld [vmem:[%s1 + $0x48] sm:$0xff]
    %v60 = vld [vmem:[%s1 + $0x50] sm:$0xff]
    %v61 = vld [vmem:[%s1 + $0x58] sm:$0xff]
    %v62 = vld [vmem:[%s1 + $0x60] sm:$0xff]
    %v63 = vld [vmem:[%s1 + $0x68] sm:$0xff]
    %v64 = vld [vmem:[%s1 + $0x70] sm:$0xff]
    %v65 = vld [vmem:[%s1 + $0x78] sm:$0xff]
    %v66 = vld [vmem:[%s2] sm:$0x1]
    %v68 = vlaneseq
    %v69 = vshrl.u32 %v68, 7
    %v70 = vsub.s32 0, %v69
    %v71 = vrot.slane %v66, %v70
    %73 = vmatprep.subr.mxu0 0.0
    %74 = vmatpush1.msra.mxu0 %v65
    %75 = vmatprep.subr.mxu0 0.0
    %76 = vmatpush1.msra.mxu0 %v64
    %77 = vmatprep.subr.mxu0 0.0
    %78 = vmatpush1.msra.mxu0 %v63
    %79 = vmatprep.subr.mxu0 0.0
    %80 = vmatpush1.msra.mxu0 %v62
    %81 = vmatprep.subr.mxu0 0.0
    %82 = vmatpush1.msra.mxu0 %v61
    %83 = vmatprep.subr.mxu0 0.0
    %84 = vmatpush1.msra.mxu0 %v60
    %85 = vmatprep.subr.mxu0 0.0
    %86 = vmatpush1.msra.mxu0 %v59
    %87 = vmatprep.subr.mxu0 0.0
    %88 = vmatpush1.msra.mxu0 %v58
    %89 = vmatprep.subr.mxu0 0.0
    %90 = vmatpush1.msra.mxu0 %v57
    %91 = vmatprep.subr.mxu0 0.0
    %92 = vmatpush1.msra.mxu0 %v56
    %93 = vmatprep.subr.mxu0 0.0
    %94 = vmatpush1.msra.mxu0 %v55
    %95 = vmatprep.subr.mxu0 0.0
    %96 = vmatpush1.msra.mxu0 %v54
    %97 = vmatprep.subr.mxu0 0.0
    %98 = vmatpush1.msra.mxu0 %v53
    %99 = vmatprep.subr.mxu0 0.0
    %100 = vmatpush1.msra.mxu0 %v52
    %101 = vmatprep.subr.mxu0 0.0
    %102 = vmatpush1.msra.mxu0 %v51
    %103 = vmatprep.subr.mxu0 0.0
    %104 = vmatpush1.msra.mxu0 %v50
    %105 = vmatprep.subr.mxu0 0.0
    %106 = vmatpush2.msra.mxu0 0.0
    %107 = vmatprep.subr.mxu0 0.0
    %108 = vmatpush2.msra.mxu0 0.0
    %109 = vmatprep.subr.mxu0 0.0
    %110 = vmatpush2.msra.mxu0 0.0
    %111 = vmatprep.subr.mxu0 0.0
    %112 = vmatpush2.msra.mxu0 0.0
    %113 = vmatprep.subr.mxu0 0.0
    %114 = vmatpush2.msra.mxu0 0.0
    %115 = vmatprep.subr.mxu0 0.0
    %116 = vmatpush2.msra.mxu0 0.0
    %117 = vmatprep.subr.mxu0 0.0
    %118 = vmatpush2.msra.mxu0 0.0
    %119 = vmatprep.subr.mxu0 0.0
    %120 = vmatpush2.msra.mxu0 0.0
    %121 = vmatprep.subr.mxu0 0.0
    %122 = vmatpush2.msra.mxu0 0.0
    %123 = vmatprep.subr.mxu0 0.0
    %124 = vmatpush2.msra.mxu0 0.0
    %125 = vmatprep.subr.mxu0 0.0
    %126 = vmatpush2.msra.mxu0 0.0
    %127 = vmatprep.subr.mxu0 0.0
    %128 = vmatpush2.msra.mxu0 0.0
    %129 = vmatprep.subr.mxu0 0.0
    %130 = vmatpush2.msra.mxu0 0.0
    %131 = vmatprep.subr.mxu0 0.0
    %132 = vmatpush2.msra.mxu0 0.0
    %133 = vmatprep.subr.mxu0 0.0
    %134 = vmatpush2.msra.mxu0 0.0
    %135 = vmatprep.subr.mxu0 0.0
    %136 = vmatpush2.msra.mxu0 0.0
    %137 = vmatprep.mubr.f32.mxu0 0.0
    %138 = vmatmul.mubr.f32.gmra.mxu0 %v49
    %v139 = vpop.f32.mrf.mxu0
    %v140 = vadd.f32 %v71, %v139
    %v141 = vpop.f32.mrf.mxu0
    %142 = vdwg.mxu0
    %143 = vst [vmem:[%s3] sm:$0x3] %v140
  $region21: #{_forward_impl.1} parent=0 // pred_fallthru
    _
  // Predicated region
  $region22: #{_forward_impl.1} parent=0 // pred_check
    _
  $region23: #{_forward_impl.1} parent=0 // pred_check_branch
    %145 = sbr.rel (0) target = $region25
  $region24: #{_forward_impl.1} parent=0 // pred_region
    _
  $region25: #{_forward_impl.1} parent=0 // pred_fallthru
    _
  // Predicated region
  $region26: #{_forward_impl.1} parent=0 // pred_check
    _
  $region27: #{_forward_impl.1} parent=0 // pred_check_branch
    %147 = sbr.rel (0) target = $region29
  $region28: #{_forward_impl.1} parent=0 // pred_region
    _
  $region29: #{_forward_impl.1} parent=0 // pred_fallthru
    _

</llo_original>
